<compile_context>
chip_gen: v7x
topology: tpu7x:2x2x1
jax: 0.10.0
libtpu: 0.0.40
codegen_flags: <defaults>
</compile_context>

<pallas_src>
import jax
import jax.numpy as jnp
from jax.experimental import pallas as pl
from jax.experimental.pallas import tpu as pltpu


def _mlp_kernel(x_ref, w1_ref, b1_ref, w2_ref, b2_ref, w3_ref, b3_ref, o_ref):
    # x_ref: (obs_dim, tile_n)  -- rows of the batch live on lanes.
    x = x_ref[...]
    # Layer 1: (hidden, obs_dim) @ (obs_dim, tile_n) -> (hidden, tile_n)
    h1 = jnp.dot(w1_ref[...], x, preferred_element_type=jnp.float32) + b1_ref[...]
    h1 = jnp.maximum(h1, 0.0)
    # Layer 2: (hidden, hidden) @ (hidden, tile_n) -> (hidden, tile_n)
    h2 = jnp.dot(w2_ref[...], h1, preferred_element_type=jnp.float32) + b2_ref[...]
    h2 = jnp.maximum(h2, 0.0)
    # Layer 3 (1-wide): broadcast-multiply (VPU) + sublane reduce (XLU),
    # avoiding an MXU push/pop for a single output column.
    out = jnp.sum(h2 * w3_ref[...], axis=0, keepdims=True) + b3_ref[...]  # (1, tile_n)
    o_ref[...] = out.astype(o_ref.dtype)


def nn_baseline_forward(x, params, *, tile_n=512):
    """network(x): x is (N, obs_dim) float32 -> returns (N, 1) float32."""
    w1, b1, w2, b2, w3, b3 = params
    n, obs_dim = x.shape
    hidden = w1.shape[1]

    # Transposed / lane-dense layout (done once in XLA, outside the kernel).
    xT = x.T                                    # (obs_dim, N)
    w1T = w1.T                                  # (hidden, obs_dim)
    w2T = w2.T                                  # (hidden, hidden)
    b1T = b1.reshape(hidden, 1)                 # bias broadcasts over lanes
    b2T = b2.reshape(hidden, 1)
    w3c = w3.reshape(hidden, 1)                 # used as broadcast multiplier
    b3c = b3.reshape(1, 1)

    # Pad N up to a tile multiple so any (bs, path_len) works; slice back below.
    n_tiles = pl.cdiv(n, tile_n)
    n_pad = n_tiles * tile_n
    if n_pad != n:
        xT = jnp.pad(xT, ((0, 0), (0, n_pad - n)))

    full = lambda i: (0, 0)  # weights / biases: whole array, resident every step

    outT = pl.pallas_call(
        _mlp_kernel,
        out_shape=jax.ShapeDtypeStruct((1, n_pad), jnp.float32),
        grid_spec=pltpu.PrefetchScalarGridSpec(
            num_scalar_prefetch=0,
            grid=(n_tiles,),
            in_specs=[
                pl.BlockSpec((obs_dim, tile_n), lambda i: (0, i)),   # xT tile
                pl.BlockSpec((hidden, obs_dim), full),               # w1T
                pl.BlockSpec((hidden, 1), full),                     # b1
                pl.BlockSpec((hidden, hidden), full),                # w2T
                pl.BlockSpec((hidden, 1), full),                     # b2
                pl.BlockSpec((hidden, 1), full),                     # w3
                pl.BlockSpec((1, 1), full),                          # b3
            ],
            out_specs=pl.BlockSpec((1, tile_n), lambda i: (0, i)),   # lane-dense
        ),
        compiler_params=pltpu.CompilerParams(
            dimension_semantics=("parallel",)),
    )(xT, w1T, b1T, w2T, b2T, w3c, b3c)

    return outT[:, :n].reshape(n, 1)            # back to (N, 1)


def nn_baseline_predict(obs, params, *, tile_n=512):
    """NNBaseline.predict: obs (bs, path_len, obs_dim) -> (bs, path_len)."""
    bs, path_len, obs_dim = obs.shape
    x = obs.reshape(-1, obs_dim).astype(jnp.float32)
    out = nn_baseline_forward(x, params, tile_n=tile_n)   # (bs*path_len, 1)
    return out.reshape(-1, path_len)                      # .view(-1, path_len)


def init_params(key, obs_dim, hidden):
    """Deterministic Xavier-uniform init (matches xavier_init in the module)."""
    def xavier(k, fan_in, fan_out):
        limit = (6.0 / (fan_in + fan_out)) ** 0.5
        return jax.random.uniform(k, (fan_in, fan_out), jnp.float32, -limit, limit)

    k1, k2, k3 = jax.random.split(key, 3)
    w1 = xavier(k1, obs_dim, hidden)
    b1 = jnp.zeros((1, hidden), jnp.float32)
    w2 = xavier(k2, hidden, hidden)
    b2 = jnp.zeros((1, hidden), jnp.float32)
    w3 = xavier(k3, hidden, 1)
    b3 = jnp.zeros((1, 1), jnp.float32)
    return (w1, b1, w2, b2, w3, b3)


def _reference(x, params):
    """Plain-JAX reference for correctness checking."""
    w1, b1, w2, b2, w3, b3 = params
    h1 = jnp.maximum(x @ w1 + b1, 0.0)
    h2 = jnp.maximum(h1 @ w2 + b2, 0.0)
    return h2 @ w3 + b3


if __name__ == "__main__":
    # Small shapes implied by predict(): (bs, path_len, obs_dim)
    bs, path_len, obs_dim, hidden = 2, 8, 4, 32

    key = jax.random.PRNGKey(0)
    k_obs, k_params = jax.random.split(key)

    obs = jax.random.normal(k_obs, (bs, path_len, obs_dim), jnp.float32)
    params = init_params(k_params, obs_dim, hidden)

    out = nn_baseline_predict(obs, params)               # default tile_n=512
    out = jax.block_until_ready(out)

    # Sanity check against the pure-JAX reference.
    ref = _reference(obs.reshape(-1, obs_dim), params).reshape(-1, path_len)
    assert out.shape == (bs, path_len)
    assert jnp.allclose(out, ref, atol=1e-5, rtol=1e-5)

    # Also exercise a non-tile-multiple N with a grid of several steps.
    bs2, path_len2 = 5, 37                                # N = 185, tile_n = 128
    obs2 = jax.random.normal(jax.random.PRNGKey(1), (bs2, path_len2, obs_dim),
                             jnp.float32)
    out2 = jax.block_until_ready(nn_baseline_predict(obs2, params, tile_n=128))
    ref2 = _reference(obs2.reshape(-1, obs_dim), params).reshape(-1, path_len2)
    assert out2.shape == (bs2, path_len2)
    assert jnp.allclose(out2, ref2, atol=1e-5, rtol=1e-5)

    print("KERNEL_OK")
</pallas_src>

<mosaic_0001>
module attributes {stable_mosaic.version = 11 : i64} {
  func.func @_mlp_kernel(%arg0: i32, %arg1: memref<4x512xf32, #tpu.memory_space<vmem>>, %arg2: memref<32x4xf32, #tpu.memory_space<vmem>>, %arg3: memref<32x1xf32, #tpu.memory_space<vmem>>, %arg4: memref<32x32xf32, #tpu.memory_space<vmem>>, %arg5: memref<32x1xf32, #tpu.memory_space<vmem>>, %arg6: memref<32x1xf32, #tpu.memory_space<vmem>>, %arg7: memref<1x1xf32, #tpu.memory_space<vmem>>, %arg8: memref<1x512xf32, #tpu.memory_space<vmem>>) attributes {dimension_semantics = [#tpu.dimension_semantics<parallel>], iteration_bounds = array<i64: 1>, scalar_prefetch = 0 : i64, scratch_operands = 0 : i64, tpu.core_type = #tpu.core_type<tc>, window_params = [{transform_indices = @transform_0, window_bounds = array<i64: 4, 512>}, {pipeline_mode = #tpu.pipeline_mode<synchronous>, transform_indices = @transform_1, window_bounds = array<i64: 32, 4>}, {pipeline_mode = #tpu.pipeline_mode<synchronous>, transform_indices = @transform_2, window_bounds = array<i64: 32, 1>}, {pipeline_mode = #tpu.pipeline_mode<synchronous>, transform_indices = @transform_3, window_bounds = array<i64: 32, 32>}, {pipeline_mode = #tpu.pipeline_mode<synchronous>, transform_indices = @transform_4, window_bounds = array<i64: 32, 1>}, {pipeline_mode = #tpu.pipeline_mode<synchronous>, transform_indices = @transform_5, window_bounds = array<i64: 32, 1>}, {pipeline_mode = #tpu.pipeline_mode<synchronous>, transform_indices = @transform_6, window_bounds = array<i64: 1, 1>}, {transform_indices = @transform_7, window_bounds = array<i64: 1, 512>}]} {
    %c0 = arith.constant 0 : index
    %c0_0 = arith.constant 0 : index
    %0 = vector.load %arg1[%c0, %c0_0] : memref<4x512xf32, #tpu.memory_space<vmem>>, vector<4x512xf32>
    %c0_1 = arith.constant 0 : index
    %c0_2 = arith.constant 0 : index
    %1 = vector.load %arg2[%c0_1, %c0_2] : memref<32x4xf32, #tpu.memory_space<vmem>>, vector<32x4xf32>
    %cst = arith.constant dense<0.000000e+00> : vector<32x512xf32>
    %2 = tpu.matmul %1, %0, %cst {dimension_numbers = #tpu.dot_dimension_numbers<[1], [0], [0], [1], [0, 0, 1, 1], [], []>} : vector<32x4xf32>, vector<4x512xf32>, vector<32x512xf32> -> vector<32x512xf32>
    %c0_3 = arith.constant 0 : index
    %c0_4 = arith.constant 0 : index
    %3 = vector.load %arg3[%c0_3, %c0_4] : memref<32x1xf32, #tpu.memory_space<vmem>>, vector<32x1xf32>
    %4 = vector.broadcast %3 : vector<32x1xf32> to vector<32x512xf32>
    %5 = arith.addf %2, %4 : vector<32x512xf32>
    %cst_5 = arith.constant 0.000000e+00 : f32
    %6 = vector.broadcast %cst_5 : f32 to vector<32x512xf32>
    %7 = arith.maximumf %5, %6 : vector<32x512xf32>
    %c0_6 = arith.constant 0 : index
    %c0_7 = arith.constant 0 : index
    %8 = vector.load %arg4[%c0_6, %c0_7] : memref<32x32xf32, #tpu.memory_space<vmem>>, vector<32x32xf32>
    %cst_8 = arith.constant dense<0.000000e+00> : vector<32x512xf32>
    %9 = tpu.matmul %8, %7, %cst_8 {dimension_numbers = #tpu.dot_dimension_numbers<[1], [0], [0], [1], [0, 0, 1, 1], [], []>} : vector<32x32xf32>, vector<32x512xf32>, vector<32x512xf32> -> vector<32x512xf32>
    %c0_9 = arith.constant 0 : index
    %c0_10 = arith.constant 0 : index
    %10 = vector.load %arg5[%c0_9, %c0_10] : memref<32x1xf32, #tpu.memory_space<vmem>>, vector<32x1xf32>
    %11 = vector.broadcast %10 : vector<32x1xf32> to vector<32x512xf32>
    %12 = arith.addf %9, %11 : vector<32x512xf32>
    %cst_11 = arith.constant 0.000000e+00 : f32
    %13 = vector.broadcast %cst_11 : f32 to vector<32x512xf32>
    %14 = arith.maximumf %12, %13 : vector<32x512xf32>
    %c0_12 = arith.constant 0 : index
    %c0_13 = arith.constant 0 : index
    %15 = vector.load %arg6[%c0_12, %c0_13] : memref<32x1xf32, #tpu.memory_space<vmem>>, vector<32x1xf32>
    %16 = vector.broadcast %15 : vector<32x1xf32> to vector<32x512xf32>
    %17 = arith.mulf %14, %16 : vector<32x512xf32>
    %cst_14 = arith.constant dense<0.000000e+00> : vector<512xf32>
    %18 = vector.multi_reduction <add>, %17, %cst_14 [0] : vector<32x512xf32> to vector<512xf32>
    %19 = vector.shape_cast %18 : vector<512xf32> to vector<1x512xf32>
    %c0_15 = arith.constant 0 : index
    %c0_16 = arith.constant 0 : index
    %20 = vector.load %arg7[%c0_15, %c0_16] : memref<1x1xf32, #tpu.memory_space<vmem>>, vector<1x1xf32>
    %21 = vector.broadcast %20 : vector<1x1xf32> to vector<1x512xf32>
    %22 = arith.addf %19, %21 : vector<1x512xf32>
    %c0_17 = arith.constant 0 : index
    %c0_18 = arith.constant 0 : index
    %23 = vector.load %arg8[%c0_17, %c0_18] : memref<1x512xf32, #tpu.memory_space<vmem>>, vector<1x512xf32>
    tpu.vector_store %arg8[%c0_17, %c0_18], %22 {strides = array<i32>} : memref<1x512xf32, #tpu.memory_space<vmem>>, vector<1x512xf32>,
    return
  }
  func.func @transform_0(%arg0: i32) -> (i32, i32) {
    %c0_i32 = arith.constant 0 : i32
    %c0_i32_0 = arith.constant 0 : i32
    return %c0_i32, %arg0 : i32, i32
  }
  func.func @transform_1(%arg0: i32) -> (i32, i32) {
    %c0_i32 = arith.constant 0 : i32
    %c0_i32_0 = arith.constant 0 : i32
    %c0_i32_1 = arith.constant 0 : i32
    return %c0_i32, %c0_i32_0 : i32, i32
  }
  func.func @transform_2(%arg0: i32) -> (i32, i32) {
    %c0_i32 = arith.constant 0 : i32
    %c0_i32_0 = arith.constant 0 : i32
    %c0_i32_1 = arith.constant 0 : i32
    return %c0_i32, %c0_i32_0 : i32, i32
  }
  func.func @transform_3(%arg0: i32) -> (i32, i32) {
    %c0_i32 = arith.constant 0 : i32
    %c0_i32_0 = arith.constant 0 : i32
    %c0_i32_1 = arith.constant 0 : i32
    return %c0_i32, %c0_i32_0 : i32, i32
  }
  func.func @transform_4(%arg0: i32) -> (i32, i32) {
    %c0_i32 = arith.constant 0 : i32
    %c0_i32_0 = arith.constant 0 : i32
    %c0_i32_1 = arith.constant 0 : i32
    return %c0_i32, %c0_i32_0 : i32, i32
  }
  func.func @transform_5(%arg0: i32) -> (i32, i32) {
    %c0_i32 = arith.constant 0 : i32
    %c0_i32_0 = arith.constant 0 : i32
    %c0_i32_1 = arith.constant 0 : i32
    return %c0_i32, %c0_i32_0 : i32, i32
  }
  func.func @transform_6(%arg0: i32) -> (i32, i32) {
    %c0_i32 = arith.constant 0 : i32
    %c0_i32_0 = arith.constant 0 : i32
    %c0_i32_1 = arith.constant 0 : i32
    return %c0_i32, %c0_i32_0 : i32, i32
  }
  func.func @transform_7(%arg0: i32) -> (i32, i32) {
    %c0_i32 = arith.constant 0 : i32
    %c0_i32_0 = arith.constant 0 : i32
    return %c0_i32, %arg0 : i32, i32
  }
}

</mosaic_0001>

<llo_original>
// kernel: tpu_custom_call.1
$region0: #{tpu_custom_call.1}
  #allocation0 [shape = 'u32[]', space=smem, size = 0x4, offset = 0x4, fixed_abs, tag = 'smem constant byte address 0x4 - core index']
  #allocation1 [shape = 'u32[144,128]{1,0:T(1,128)}', space=vmem, size = 0x12000, scoped, tag = 'internal scratch']
  #allocation2 [shape = 'f32[1,1]{1,0:T(1,128)S(1)}', space=vmem, size = 0x200, scoped, tag = 'scoped memory for tpu_custom_call.1']
  %s0 = inlined_call_operand.vmem [shape: f32[4,512], index: 0, kind: input, shape index: {}]
  %s1 = inlined_call_operand.vmem [shape: f32[32,4], index: 1, kind: input, shape index: {}]
  %s2 = inlined_call_operand.vmem [shape: f32[32,1], index: 2, kind: input, shape index: {}]
  %s3 = inlined_call_operand.vmem [shape: f32[32,32], index: 3, kind: input, shape index: {}]
  %s4 = inlined_call_operand.vmem [shape: f32[32,1], index: 4, kind: input, shape index: {}]
  %s5 = inlined_call_operand.vmem [shape: f32[32,1], index: 5, kind: input, shape index: {}]
  %s6 = inlined_call_operand.<no memory space> [shape: f32[1,1], index: 6, kind: input, shape index: {}]
  %s7 = inlined_call_operand.hbm [shape: f32[1,512], index: 7, kind: output, shape index: {}]
  %s8 = sld [smem:[#allocation0]]
  $region38: #{tpu_custom_call.1} parent=0
    _
  %s10 = ssub.s32 1, %s8
  %s11 = scalar_select 0, %s10, %s8
  %v12 = vstv %s6
  %13 = vst [vmem:[#allocation2] sm:$0x1] %v12
  $region1: #{tpu_custom_call.1} parent=0
    #allocation3 [shape = 'u8[2048]{0}', space=vmem, size = 0x800, scoped, tag = 'output window, operand 0, single buffered']
    #allocation4 [shape = 's32[1]{0}', space=sflag, size = 0x4, scoped, tag = 'scoped memory for tpu_custom_call.1']
    %14 = vsyncpa [#allocation4], 0
    // Predicated region
    $region2: #{tpu_custom_call.1} parent=1 // pred_check
      _
    $region3: #{tpu_custom_call.1} parent=1 // pred_check_branch
      %16 = sbr.rel (0) target = $region5
    $region4: #{tpu_custom_call.1} parent=1 // pred_region
      _
    $region5: #{tpu_custom_call.1} parent=1 // pred_fallthru
      _
    // Predicated region
    $region6: #{tpu_custom_call.1} parent=1 // pred_check
      _
    $region7: #{tpu_custom_call.1} parent=1 // pred_check_branch
      %18 = sbr.rel (0) target = $region9
    $region8: #{tpu_custom_call.1} parent=1 // pred_region
      _
    $region9: #{tpu_custom_call.1} parent=1 // pred_fallthru
      _
    // Predicated region
    $region10: #{tpu_custom_call.1} parent=1 // pred_check
      _
    $region11: #{tpu_custom_call.1} parent=1 // pred_check_branch
      %20 = sbr.rel (0) target = $region13
    $region12: #{tpu_custom_call.1} parent=1 // pred_region
      _
    $region13: #{tpu_custom_call.1} parent=1 // pred_fallthru
      _
    // Predicated region
    $region14: #{tpu_custom_call.1} parent=1 // pred_check
      _
    $region15: #{tpu_custom_call.1} parent=1 // pred_check_branch
      %22 = sbr.rel (0) target = $region17
    $region16: #{tpu_custom_call.1} parent=1 // pred_region
      _
    $region17: #{tpu_custom_call.1} parent=1 // pred_fallthru
      _
    // Predicated region
    $region18: #{tpu_custom_call.1} parent=1 // pred_check
      _
    $region19: #{tpu_custom_call.1} parent=1 // pred_check_branch
      %24 = sbr.rel (0) target = $region21
    $region20: #{tpu_custom_call.1} parent=1 // pred_region
      _
    $region21: #{tpu_custom_call.1} parent=1 // pred_fallthru
      _
    // Predicated region
    $region22: #{tpu_custom_call.1} parent=1 // pred_check
      _
    $region23: #{tpu_custom_call.1} parent=1 // pred_check_branch
      %26 = sbr.rel (0) target = $region25
    $region24: #{tpu_custom_call.1} parent=1 // pred_region
      _
    $region25: #{tpu_custom_call.1} parent=1 // pred_fallthru
      _
    // Predicated region
    $region26: #{tpu_custom_call.1} parent=1 // pred_check
      _
    $region27: #{tpu_custom_call.1} parent=1 // pred_check_branch
      %28 = sbr.rel (0) target = $region29
    $region28: #{tpu_custom_call.1} parent=1 // pred_region
      _
    $region29: #{tpu_custom_call.1} parent=1 // pred_fallthru
      _
    %v29 = vld [vmem:[%s0] sm:$0xff]
    %v30 = vld [vmem:[%s0 + $0x8] sm:$0xff]
    %v31 = vld [vmem:[%s1] sm:$0xff]
    %v32 = vld [vmem:[%s1 + $0x8] sm:$0xff]
    %v33 = vld [vmem:[%s1 + $0x10] sm:$0xff]
    %v34 = vld [vmem:[%s1 + $0x18] sm:$0xff]
    %v35 = vld [vmem:[%s2] sm:$0xff]
    %v36 = vld [vmem:[%s2 + $0x8] sm:$0xff]
    %v37 = vld [vmem:[%s2 + $0x10] sm:$0xff]
    %v38 = vld [vmem:[%s2 + $0x18] sm:$0xff]
    %40 = vset.pattern.permute.xlu0 0
    %41 = vperm.xlu0 %40, %v35
    %v42 = vpop.permute.xlu0 %41
    %45 = vset.pattern.permute.xlu0 0
    %46 = vperm.xlu0 %45, %v36
    %v47 = vpop.permute.xlu0 %46
    %50 = vset.pattern.permute.xlu0 0
    %51 = vperm.xlu0 %50, %v37
    %v52 = vpop.permute.xlu0 %51
    %55 = vset.pattern.permute.xlu0 0
    %56 = vperm.xlu0 %55, %v38
    %v57 = vpop.permute.xlu0 %56
    %v61 = vcombine.high %v29, %v29
    %v62 = vcombine.high %v30, %v30
    %vm63 = vcmask 31744
    %v65 = vsel %vm63, %v31, 0
    %v68 = vsel %vm63, %v32, 0
    %v71 = vsel %vm63, %v33, 0
    %v74 = vsel %vm63, %v34, 0
    %vm76 = vcmask 1043456
    %v77 = vsel %vm76, %v29, 0
    %v79 = vsel %vm76, %v61, 0
    %v81 = vsel %vm76, %v30, 0
    %v83 = vsel %vm76, %v62, 0
    %85 = vmatprep.subr.mxu0 %v79
    %86 = vmatpush1.msra.mxu0 %v77
    %87 = vmatprep.subr.mxu0 0.0
    %88 = vmatpush1.msra.mxu0 0.0
    %89 = vmatprep.subr.mxu0 0.0
    %90 = vmatpush1.msra.mxu0 0.0
    %91 = vmatprep.subr.mxu0 0.0
    %92 = vmatpush1.msra.mxu0 0.0
    %93 = vmatprep.subr.mxu0 0.0
    %94 = vmatpush1.msra.mxu0 0.0
    %95 = vmatprep.subr.mxu0 0.0
    %96 = vmatpush1.msra.mxu0 0.0
    %97 = vmatprep.subr.mxu0 0.0
    %98 = vmatpush1.msra.mxu0 0.0
    %99 = vmatprep.subr.mxu0 0.0
    %100 = vmatpush1.msra.mxu0 0.0
    %101 = vmatprep.subr.mxu0 0.0
    %102 = vmatpush1.msra.mxu0 0.0
    %103 = vmatprep.subr.mxu0 0.0
    %104 = vmatpush1.msra.mxu0 0.0
    %105 = vmatprep.subr.mxu0 0.0
    %106 = vmatpush1.msra.mxu0 0.0
    %107 = vmatprep.subr.mxu0 0.0
    %108 = vmatpush1.msra.mxu0 0.0
    %109 = vmatprep.subr.mxu0 0.0
    %110 = vmatpush1.msra.mxu0 0.0
    %111 = vmatprep.subr.mxu0 0.0
    %112 = vmatpush1.msra.mxu0 0.0
    %113 = vmatprep.subr.mxu0 0.0
    %114 = vmatpush1.msra.mxu0 0.0
    %115 = vmatprep.subr.mxu0 0.0
    %116 = vmatpush1.msra.mxu0 0.0
    %117 = vmatprep.subr.mxu0 0.0
    %118 = vmatpush1.msra.mxu0 0.0
    %119 = vmatprep.subr.mxu0 0.0
    %120 = vmatpush1.msra.mxu0 0.0
    %121 = vmatprep.subr.mxu0 0.0
    %122 = vmatpush1.msra.mxu0 0.0
    %123 = vmatprep.subr.mxu0 0.0
    %124 = vmatpush1.msra.mxu0 0.0
    %125 = vmatprep.subr.mxu0 0.0
    %126 = vmatpush1.msra.mxu0 0.0
    %127 = vmatprep.subr.mxu0 0.0
    %128 = vmatpush1.msra.mxu0 0.0
    %129 = vmatprep.subr.mxu0 0.0
    %130 = vmatpush1.msra.mxu0 0.0
    %131 = vmatprep.subr.mxu0 0.0
    %132 = vmatpush1.msra.mxu0 0.0
    %133 = vmatprep.subr.mxu0 0.0
    %134 = vmatpush1.msra.mxu0 0.0
    %135 = vmatprep.subr.mxu0 0.0
    %136 = vmatpush1.msra.mxu0 0.0
    %137 = vmatprep.subr.mxu0 0.0
    %138 = vmatpush1.msra.mxu0 0.0
    %139 = vmatprep.subr.mxu0 0.0
    %140 = vmatpush1.msra.mxu0 0.0
    %141 = vmatprep.subr.mxu0 0.0
    %142 = vmatpush1.msra.mxu0 0.0
    %143 = vmatprep.subr.mxu0 0.0
    %144 = vmatpush1.msra.mxu0 0.0
    %145 = vmatprep.subr.mxu0 0.0
    %146 = vmatpush1.msra.mxu0 0.0
    %147 = vmatprep.subr.mxu0 0.0
    %148 = vmatpush1.msra.mxu0 0.0
    %149 = vmatprep.mubr.f32.mxu0 0.0
    %150 = vmatmul.mubr.f32.gmra.mrb[0].mxu0 %v65
    %v151 = vpop.f32.mrb[0].mxu0
    %v152 = vadd.f32 %v42, %v151
    %v153 = vpop.f32.mrb[0].mxu0
    %v154 = vadd.f32 %v42, %v153
    %155 = vmatprep.mubr.f32.mxu0 0.0
    %156 = vmatmul.mubr.f32.gmra.mrb[0].mxu0 %v68
    %v157 = vpop.f32.mrb[0].mxu0
    %v158 = vadd.f32 %v47, %v157
    %v159 = vpop.f32.mrb[0].mxu0
    %v160 = vadd.f32 %v47, %v159
    %161 = vmatprep.mubr.f32.mxu0 0.0
    %162 = vmatmul.mubr.f32.gmra.mrb[0].mxu0 %v71
    %v163 = vpop.f32.mrb[0].mxu0
    %v164 = vadd.f32 %v52, %v163
    %v165 = vpop.f32.mrb[0].mxu0
    %v166 = vadd.f32 %v52, %v165
    %167 = vmatprep.mubr.f32.mxu0 0.0
    %168 = vmatmul.mubr.f32.gmra.mrb[0].mxu0 %v74
    %v169 = vpop.f32.mrb[0].mxu0
    %v170 = vadd.f32 %v57, %v169
    %v171 = vpop.f32.mrb[0].mxu0
    %v172 = vadd.f32 %v57, %v171
    %173 = vdwg.mxu0
    %174 = vmatprep.subr.mxu0 %v83
    %175 = vmatpush1.msra.mxu0 %v81
    %176 = vmatprep.subr.mxu0 0.0
    %177 = vmatpush1.msra.mxu0 0.0
    %178 = vmatprep.subr.mxu0 0.0
    %179 = vmatpush1.msra.mxu0 0.0
    %180 = vmatprep.subr.mxu0 0.0
    %181 = vmatpush1.msra.mxu0 0.0
    %182 = vmatprep.subr.mxu0 0.0
    %183 = vmatpush1.msra.mxu0 0.0
    %184 = vmatprep.subr.mxu0 0.0
    %185 = vmatpush1.msra.mxu0 0.0
    %186 = vmatprep.subr.mxu0 0.0
    %187 = vmatpush1.msra.mxu0 0.0
    %188 = vmatprep.subr.mxu0 0.0
    %189 = vmatpush1.msra.mxu0 0.0
    %190 = vmatprep.subr.mxu0 0.0
    %191 = vmatpush1.msra.mxu0 0.0
    %192 = vmatprep.subr.mxu0 0.0
    %193 = vmatpush1.msra.mxu0 0.0
    %194 = vmatprep.subr.mxu0 0.0
    %195 = vmatpush1.msra.mxu0 0.0
    %196 = vmatprep.subr.mxu0 0.0
    %197 = vmatpush1.msra.mxu0 0.0
    %198 = vmatprep.subr.mxu0 0.0
    %199 = vmatpush1.msra.mxu0 0.0
    %200 = vmatprep.subr.mxu0 0.0
    %201 = vmatpush1.msra.mxu0 0.0
    %202 = vmatprep.subr.mxu0 0.0
    %203 = vmatpush1.msra.mxu0 0.0
    %204 = vmatprep.subr.mxu0 0.0
    %205 = vmatpush1.msra.mxu0 0.0
    %206 = vmatprep.subr.mxu0 0.0
    %207 = vmatpush1.msra.mxu0 0.0
    %208 = vmatprep.subr.mxu0 0.0
    %209 = vmatpush1.msra.mxu0 0.0
    %210 = vmatprep.subr.mxu0 0.0
    %211 = vmatpush1.msra.mxu0 0.0
    %212 = vmatprep.subr.mxu0 0.0
    %213 = vmatpush1.msra.mxu0 0.0
    %214 = vmatprep.subr.mxu0 0.0
    %215 = vmatpush1.msra.mxu0 0.0
    %216 = vmatprep.subr.mxu0 0.0
    %217 = vmatpush1.msra.mxu0 0.0
    %218 = vmatprep.subr.mxu0 0.0
    %219 = vmatpush1.msra.mxu0 0.0
    %220 = vmatprep.subr.mxu0 0.0
    %221 = vmatpush1.msra.mxu0 0.0
    %222 = vmatprep.subr.mxu0 0.0
    %223 = vmatpush1.msra.mxu0 0.0
    %224 = vmatprep.subr.mxu0 0.0
    %225 = vmatpush1.msra.mxu0 0.0
    %226 = vmatprep.subr.mxu0 0.0
    %227 = vmatpush1.msra.mxu0 0.0
    %228 = vmatprep.subr.mxu0 0.0
    %229 = vmatpush1.msra.mxu0 0.0
    %230 = vmatprep.subr.mxu0 0.0
    %231 = vmatpush1.msra.mxu0 0.0
    %232 = vmatprep.subr.mxu0 0.0
    %233 = vmatpush1.msra.mxu0 0.0
    %234 = vmatprep.subr.mxu0 0.0
    %235 = vmatpush1.msra.mxu0 0.0
    %236 = vmatprep.subr.mxu0 0.0
    %237 = vmatpush1.msra.mxu0 0.0
    %238 = vmatprep.mubr.f32.mxu0 0.0
    %239 = vmatmul.mubr.f32.gmra.mrb[0].mxu0 %v65
    %v240 = vpop.f32.mrb[0].mxu0
    %v241 = vadd.f32 %v42, %v240
    %v242 = vpop.f32.mrb[0].mxu0
    %v243 = vadd.f32 %v42, %v242
    %244 = vmatprep.mubr.f32.mxu0 0.0
    %245 = vmatmul.mubr.f32.gmra.mrb[0].mxu0 %v68
    %v246 = vpop.f32.mrb[0].mxu0
    %v247 = vadd.f32 %v47, %v246
    %v248 = vpop.f32.mrb[0].mxu0
    %v249 = vadd.f32 %v47, %v248
    %250 = vmatprep.mubr.f32.mxu0 0.0
    %251 = vmatmul.mubr.f32.gmra.mrb[0].mxu0 %v71
    %v252 = vpop.f32.mrb[0].mxu0
    %v253 = vadd.f32 %v52, %v252
    %v254 = vpop.f32.mrb[0].mxu0
    %v255 = vadd.f32 %v52, %v254
    %256 = vmatprep.mubr.f32.mxu0 0.0
    %257 = vmatmul.mubr.f32.gmra.mrb[0].mxu0 %v74
    %v258 = vpop.f32.mrb[0].mxu0
    %v259 = vadd.f32 %v57, %v258
    %v260 = vpop.f32.mrb[0].mxu0
    %v261 = vadd.f32 %v57, %v260
    %262 = vdwg.mxu0
    %v263 = vmax.f32 %v152, 0.0
    %v264 = vmax.f32 %v154, 0.0
    %v265 = vmax.f32 %v241, 0.0
    %v266 = vmax.f32 %v243, 0.0
    %v267 = vmax.f32 %v158, 0.0
    %v268 = vmax.f32 %v160, 0.0
    %v269 = vmax.f32 %v247, 0.0
    %v270 = vmax.f32 %v249, 0.0
    %v271 = vmax.f32 %v164, 0.0
    %v272 = vmax.f32 %v166, 0.0
    %v273 = vmax.f32 %v253, 0.0
    %v274 = vmax.f32 %v255, 0.0
    %v275 = vmax.f32 %v170, 0.0
    %v276 = vmax.f32 %v172, 0.0
    %v277 = vmax.f32 %v259, 0.0
    %v278 = vmax.f32 %v261, 0.0
    %v279 = vld [vmem:[%s3] sm:$0xff]
    %v280 = vld [vmem:[%s3 + $0x8] sm:$0xff]
    %v281 = vld [vmem:[%s3 + $0x10] sm:$0xff]
    %v282 = vld [vmem:[%s3 + $0x18] sm:$0xff]
    %v283 = vld [vmem:[%s4] sm:$0xff]
    %v284 = vld [vmem:[%s4 + $0x8] sm:$0xff]
    %v285 = vld [vmem:[%s4 + $0x10] sm:$0xff]
    %v286 = vld [vmem:[%s4 + $0x18] sm:$0xff]
    %288 = vset.pattern.permute.xlu0 0
    %289 = vperm.xlu0 %288, %v283
    %v290 = vpop.permute.xlu0 %289
    %293 = vset.pattern.permute.xlu0 0
    %294 = vperm.xlu0 %293, %v284
    %v295 = vpop.permute.xlu0 %294
    %298 = vset.pattern.permute.xlu0 0
    %299 = vperm.xlu0 %298, %v285
    %v300 = vpop.permute.xlu0 %299
    %303 = vset.pattern.permute.xlu0 0
    %304 = vperm.xlu0 %303, %v286
    %v305 = vpop.permute.xlu0 %304
    %vm307 = vcmask 261120
    %v309 = vsel %vm307, %v279, 0
    %v312 = vsel %vm307, %v280, 0
    %v315 = vsel %vm307, %v281, 0
    %v318 = vsel %vm307, %v282, 0
    %320 = vmatprep.subr.mxu0 %v264
    %321 = vmatpush1.msra.mxu0 %v263
    %322 = vmatprep.subr.mxu0 %v268
    %323 = vmatpush1.msra.mxu0 %v267
    %324 = vmatprep.subr.mxu0 %v272
    %325 = vmatpush1.msra.mxu0 %v271
    %326 = vmatprep.subr.mxu0 %v276
    %327 = vmatpush1.msra.mxu0 %v275
    %328 = vmatprep.subr.mxu0 0.0
    %329 = vmatpush1.msra.mxu0 0.0
    %330 = vmatprep.subr.mxu0 0.0
    %331 = vmatpush1.msra.mxu0 0.0
    %332 = vmatprep.subr.mxu0 0.0
    %333 = vmatpush1.msra.mxu0 0.0
    %334 = vmatprep.subr.mxu0 0.0
    %335 = vmatpush1.msra.mxu0 0.0
    %336 = vmatprep.subr.mxu0 0.0
    %337 = vmatpush1.msra.mxu0 0.0
    %338 = vmatprep.subr.mxu0 0.0
    %339 = vmatpush1.msra.mxu0 0.0
    %340 = vmatprep.subr.mxu0 0.0
    %341 = vmatpush1.msra.mxu0 0.0
    %342 = vmatprep.subr.mxu0 0.0
    %343 = vmatpush1.msra.mxu0 0.0
    %344 = vmatprep.subr.mxu0 0.0
    %345 = vmatpush1.msra.mxu0 0.0
    %346 = vmatprep.subr.mxu0 0.0
    %347 = vmatpush1.msra.mxu0 0.0
    %348 = vmatprep.subr.mxu0 0.0
    %349 = vmatpush1.msra.mxu0 0.0
    %350 = vmatprep.subr.mxu0 0.0
    %351 = vmatpush1.msra.mxu0 0.0
    %352 = vmatprep.subr.mxu0 0.0
    %353 = vmatpush1.msra.mxu0 0.0
    %354 = vmatprep.subr.mxu0 0.0
    %355 = vmatpush1.msra.mxu0 0.0
    %356 = vmatprep.subr.mxu0 0.0
    %357 = vmatpush1.msra.mxu0 0.0
    %358 = vmatprep.subr.mxu0 0.0
    %359 = vmatpush1.msra.mxu0 0.0
    %360 = vmatprep.subr.mxu0 0.0
    %361 = vmatpush1.msra.mxu0 0.0
    %362 = vmatprep.subr.mxu0 0.0
    %363 = vmatpush1.msra.mxu0 0.0
    %364 = vmatprep.subr.mxu0 0.0
    %365 = vmatpush1.msra.mxu0 0.0
    %366 = vmatprep.subr.mxu0 0.0
    %367 = vmatpush1.msra.mxu0 0.0
    %368 = vmatprep.subr.mxu0 0.0
    %369 = vmatpush1.msra.mxu0 0.0
    %370 = vmatprep.subr.mxu0 0.0
    %371 = vmatpush1.msra.mxu0 0.0
    %372 = vmatprep.subr.mxu0 0.0
    %373 = vmatpush1.msra.mxu0 0.0
    %374 = vmatprep.subr.mxu0 0.0
    %375 = vmatpush1.msra.mxu0 0.0
    %376 = vmatprep.subr.mxu0 0.0
    %377 = vmatpush1.msra.mxu0 0.0
    %378 = vmatprep.subr.mxu0 0.0
    %379 = vmatpush1.msra.mxu0 0.0
    %380 = vmatprep.subr.mxu0 0.0
    %381 = vmatpush1.msra.mxu0 0.0
    %382 = vmatprep.subr.mxu0 0.0
    %383 = vmatpush1.msra.mxu0 0.0
    %384 = vmatprep.mubr.f32.mxu0 0.0
    %385 = vmatmul.mubr.f32.gmra.mrb[0].mxu0 %v309
    %v386 = vpop.f32.mrb[0].mxu0
    %v387 = vadd.f32 %v290, %v386
    %v388 = vpop.f32.mrb[0].mxu0
    %v389 = vadd.f32 %v290, %v388
    %390 = vmatprep.mubr.f32.mxu0 0.0
    %391 = vmatmul.mubr.f32.gmra.mrb[0].mxu0 %v312
    %v392 = vpop.f32.mrb[0].mxu0
    %v393 = vadd.f32 %v295, %v392
    %v394 = vpop.f32.mrb[0].mxu0
    %v395 = vadd.f32 %v295, %v394
    %396 = vmatprep.mubr.f32.mxu0 0.0
    %397 = vmatmul.mubr.f32.gmra.mrb[0].mxu0 %v315
    %v398 = vpop.f32.mrb[0].mxu0
    %v399 = vadd.f32 %v300, %v398
    %v400 = vpop.f32.mrb[0].mxu0
    %v401 = vadd.f32 %v300, %v400
    %402 = vmatprep.mubr.f32.mxu0 0.0
    %403 = vmatmul.mubr.f32.gmra.mrb[0].mxu0 %v318
    %v404 = vpop.f32.mrb[0].mxu0
    %v405 = vadd.f32 %v305, %v404
    %v406 = vpop.f32.mrb[0].mxu0
    %v407 = vadd.f32 %v305, %v406
    %408 = vdwg.mxu0
    %409 = vmatprep.subr.mxu0 %v266
    %410 = vmatpush1.msra.mxu0 %v265
    %411 = vmatprep.subr.mxu0 %v270
    %412 = vmatpush1.msra.mxu0 %v269
    %413 = vmatprep.subr.mxu0 %v274
    %414 = vmatpush1.msra.mxu0 %v273
    %415 = vmatprep.subr.mxu0 %v278
    %416 = vmatpush1.msra.mxu0 %v277
    %417 = vmatprep.subr.mxu0 0.0
    %418 = vmatpush1.msra.mxu0 0.0
    %419 = vmatprep.subr.mxu0 0.0
    %420 = vmatpush1.msra.mxu0 0.0
    %421 = vmatprep.subr.mxu0 0.0
    %422 = vmatpush1.msra.mxu0 0.0
    %423 = vmatprep.subr.mxu0 0.0
    %424 = vmatpush1.msra.mxu0 0.0
    %425 = vmatprep.subr.mxu0 0.0
    %426 = vmatpush1.msra.mxu0 0.0
    %427 = vmatprep.subr.mxu0 0.0
    %428 = vmatpush1.msra.mxu0 0.0
    %429 = vmatprep.subr.mxu0 0.0
    %430 = vmatpush1.msra.mxu0 0.0
    %431 = vmatprep.subr.mxu0 0.0
    %432 = vmatpush1.msra.mxu0 0.0
    %433 = vmatprep.subr.mxu0 0.0
    %434 = vmatpush1.msra.mxu0 0.0
    %435 = vmatprep.subr.mxu0 0.0
    %436 = vmatpush1.msra.mxu0 0.0
    %437 = vmatprep.subr.mxu0 0.0
    %438 = vmatpush1.msra.mxu0 0.0
    %439 = vmatprep.subr.mxu0 0.0
    %440 = vmatpush1.msra.mxu0 0.0
    %441 = vmatprep.subr.mxu0 0.0
    %442 = vmatpush1.msra.mxu0 0.0
    %443 = vmatprep.subr.mxu0 0.0
    %444 = vmatpush1.msra.mxu0 0.0
    %445 = vmatprep.subr.mxu0 0.0
    %446 = vmatpush1.msra.mxu0 0.0
    %447 = vmatprep.subr.mxu0 0.0
    %448 = vmatpush1.msra.mxu0 0.0
    %449 = vmatprep.subr.mxu0 0.0
    %450 = vmatpush1.msra.mxu0 0.0
    %451 = vmatprep.subr.mxu0 0.0
    %452 = vmatpush1.msra.mxu0 0.0
    %453 = vmatprep.subr.mxu0 0.0
    %454 = vmatpush1.msra.mxu0 0.0
    %455 = vmatprep.subr.mxu0 0.0
    %456 = vmatpush1.msra.mxu0 0.0
    %457 = vmatprep.subr.mxu0 0.0
    %458 = vmatpush1.msra.mxu0 0.0
    %459 = vmatprep.subr.mxu0 0.0
    %460 = vmatpush1.msra.mxu0 0.0
    %461 = vmatprep.subr.mxu0 0.0
    %462 = vmatpush1.msra.mxu0 0.0
    %463 = vmatprep.subr.mxu0 0.0
    %464 = vmatpush1.msra.mxu0 0.0
    %465 = vmatprep.subr.mxu0 0.0
    %466 = vmatpush1.msra.mxu0 0.0
    %467 = vmatprep.subr.mxu0 0.0
    %468 = vmatpush1.msra.mxu0 0.0
    %469 = vmatprep.subr.mxu0 0.0
    %470 = vmatpush1.msra.mxu0 0.0
    %471 = vmatprep.subr.mxu0 0.0
    %472 = vmatpush1.msra.mxu0 0.0
    %473 = vmatprep.mubr.f32.mxu0 0.0
    %474 = vmatmul.mubr.f32.gmra.mrb[0].mxu0 %v309
    %v475 = vpop.f32.mrb[0].mxu0
    %v476 = vadd.f32 %v290, %v475
    %v477 = vpop.f32.mrb[0].mxu0
    %v478 = vadd.f32 %v290, %v477
    %479 = vmatprep.mubr.f32.mxu0 0.0
    %480 = vmatmul.mubr.f32.gmra.mrb[0].mxu0 %v312
    %v481 = vpop.f32.mrb[0].mxu0
    %v482 = vadd.f32 %v295, %v481
    %v483 = vpop.f32.mrb[0].mxu0
    %v484 = vadd.f32 %v295, %v483
    %485 = vmatprep.mubr.f32.mxu0 0.0
    %486 = vmatmul.mubr.f32.gmra.mrb[0].mxu0 %v315
    %v487 = vpop.f32.mrb[0].mxu0
    %v488 = vadd.f32 %v300, %v487
    %v489 = vpop.f32.mrb[0].mxu0
    %v490 = vadd.f32 %v300, %v489
    %491 = vmatprep.mubr.f32.mxu0 0.0
    %492 = vmatmul.mubr.f32.gmra.mrb[0].mxu0 %v318
    %v493 = vpop.f32.mrb[0].mxu0
    %v494 = vadd.f32 %v305, %v493
    %v495 = vpop.f32.mrb[0].mxu0
    %v496 = vadd.f32 %v305, %v495
    %497 = vdwg.mxu0
    %v498 = vmax.f32 %v387, 0.0
    %v499 = vmax.f32 %v389, 0.0
    %v500 = vmax.f32 %v476, 0.0
    %v501 = vmax.f32 %v478, 0.0
    %v502 = vmax.f32 %v393, 0.0
    %v503 = vmax.f32 %v395, 0.0
    %v504 = vmax.f32 %v482, 0.0
    %v505 = vmax.f32 %v484, 0.0
    %v506 = vmax.f32 %v399, 0.0
    %v507 = vmax.f32 %v401, 0.0
    %v508 = vmax.f32 %v488, 0.0
    %v509 = vmax.f32 %v490, 0.0
    %v510 = vmax.f32 %v405, 0.0
    %v511 = vmax.f32 %v407, 0.0
    %v512 = vmax.f32 %v494, 0.0
    %v513 = vmax.f32 %v496, 0.0
    %v514 = vld [vmem:[%s5] sm:$0xff]
    %v515 = vld [vmem:[%s5 + $0x8] sm:$0xff]
    %v516 = vld [vmem:[%s5 + $0x10] sm:$0xff]
    %v517 = vld [vmem:[%s5 + $0x18] sm:$0xff]
    %519 = vset.pattern.permute.xlu0 0
    %520 = vperm.xlu0 %519, %v514
    %v521 = vpop.permute.xlu0 %520
    %524 = vset.pattern.permute.xlu0 0
    %525 = vperm.xlu0 %524, %v515
    %v526 = vpop.permute.xlu0 %525
    %529 = vset.pattern.permute.xlu0 0
    %530 = vperm.xlu0 %529, %v516
    %v531 = vpop.permute.xlu0 %530
    %534 = vset.pattern.permute.xlu0 0
    %535 = vperm.xlu0 %534, %v517
    %v536 = vpop.permute.xlu0 %535
    %v538 = vmul.f32 %v498, %v521
    %v539 = vmul.f32 %v499, %v521
    %v540 = vmul.f32 %v500, %v521
    %v541 = vmul.f32 %v501, %v521
    %v542 = vmul.f32 %v502, %v526
    %v543 = vmul.f32 %v503, %v526
    %v544 = vmul.f32 %v504, %v526
    %v545 = vmul.f32 %v505, %v526
    %v546 = vmul.f32 %v506, %v531
    %v547 = vmul.f32 %v507, %v531
    %v548 = vmul.f32 %v508, %v531
    %v549 = vmul.f32 %v509, %v531
    %v550 = vmul.f32 %v510, %v536
    %v551 = vmul.f32 %v511, %v536
    %v552 = vmul.f32 %v512, %v536
    %v553 = vmul.f32 %v513, %v536
    %v554 = vadd.f32 %v538, %v542
    %v555 = vadd.f32 %v554, %v546
    %v556 = vadd.f32 %v555, %v550
    %v557 = vrot.slane %v556, 4
    %v558 = vadd.f32 %v556, %v557
    %v559 = vrot.slane %v558, 2
    %v560 = vadd.f32 %v558, %v559
    %v561 = vrot.slane %v560, 1
    %v562 = vadd.f32 %v560, %v561
    %v563 = vadd.f32 %v539, %v543
    %v564 = vadd.f32 %v563, %v547
    %v565 = vadd.f32 %v564, %v551
    %v566 = vrot.slane %v565, 4
    %v567 = vadd.f32 %v565, %v566
    %v568 = vrot.slane %v567, 2
    %v569 = vadd.f32 %v567, %v568
    %v570 = vrot.slane %v569, 1
    %v571 = vadd.f32 %v569, %v570
    %v572 = vadd.f32 %v540, %v544
    %v573 = vadd.f32 %v572, %v548
    %v574 = vadd.f32 %v573, %v552
    %v575 = vrot.slane %v574, 4
    %v576 = vadd.f32 %v574, %v575
    %v577 = vrot.slane %v576, 2
    %v578 = vadd.f32 %v576, %v577
    %v579 = vrot.slane %v578, 1
    %v580 = vadd.f32 %v578, %v579
    %v581 = vadd.f32 %v541, %v545
    %v582 = vadd.f32 %v581, %v549
    %v583 = vadd.f32 %v582, %v553
    %v584 = vrot.slane %v583, 4
    %v585 = vadd.f32 %v583, %v584
    %v586 = vrot.slane %v585, 2
    %v587 = vadd.f32 %v585, %v586
    %v588 = vrot.slane %v587, 1
    %v589 = vadd.f32 %v587, %v588
    %v590 = vld [vmem:[#allocation2] sm:$0x1]
    %592 = vset.pattern.permute.xlu0 0
    %593 = vperm.xlu0 %592, %v590
    %v594 = vpop.permute.xlu0 %593
    %v596 = vlaneseq
    %v597 = vshrl.u32 %v596, 7
    %v598 = vsub.s32 0, %v597
    %v599 = vrot.slane %v594, %v598
    %v600 = vadd.f32 %v562, %v599
    %v601 = vadd.f32 %v571, %v599
    %v602 = vadd.f32 %v580, %v599
    %v603 = vadd.f32 %v589, %v599
    %v608 = vcombine.low %v600, %v601
    %v609 = vcombine.low %v602, %v603
    %v611 = vunpack.c.l.s4 1966171168
    %v612 = vunpack.c.0.s8 %v611
    %v613 = vlaneseq
    %v614 = vshrl.u32 %v613, 7
    %v615 = vsub.s32 %v612, %v614
    %v616 = vrot.slane %v608, %v615
    %v618 = vunpack.c.l.s4 1966171168
    %v619 = vunpack.c.0.s8 %v618
    %v620 = vlaneseq
    %v621 = vshrl.u32 %v620, 7
    %v622 = vsub.s32 %v619, %v621
    %v623 = vrot.slane %v609, %v622
    %v624 = vcombine.low %v616, %v623
    %v626 = vunpack.c.l.s4 1966171168
    %v627 = vunpack.c.0.s8 %v626
    %v628 = vlaneseq
    %v629 = vshrl.u32 %v628, 7
    %v630 = vsub.s32 %v627, %v629
    %v631 = vrot.slane %v624, %v630
    %v633 = vlaneseq
    %vm634 = vcmp.ge.s32.totalorder %v633, 0
    %vm635 = vcmp.lt.s32.totalorder %v633, 512
    %vm636 = vmand %vm634, %vm635
    %637 = vst.msk [vmem:[#allocation3] sm:$0xf] %vm636, %v631
    // Predicated region
    $region30: #{tpu_custom_call.1} parent=1 // pred_check
      _
    $region31: #{tpu_custom_call.1} parent=1 // pred_check_branch
      %639 = sbr.rel (0) target = $region33
    $region32: #{tpu_custom_call.1} parent=1 // pred_region
      %s641 = ssub.s32 64, 64
      %642 = vsyncadd [#allocation4], %s641
      %s644 = sshll.u32 [#allocation3], 4
      %s645 = int_to_ptr.vmem [resolvable:$true] %s644
      %647 = dma.vmem_to_hbm [thread:$0]  %s645, 64, %s7, [#allocation4]
    $region33: #{tpu_custom_call.1} parent=1 // pred_fallthru
      _
    // Predicated region
    $region34: #{tpu_custom_call.1} parent=1 // pred_check
      _
    $region35: #{tpu_custom_call.1} parent=1 // pred_check_branch
      %649 = sbr.rel (0) target = $region37
    $region36: #{tpu_custom_call.1} parent=1 // pred_region
      %650 = dma.done [#allocation4], 64
    $region37: #{tpu_custom_call.1} parent=1 // pred_fallthru
      _
    %651 = vsyncpa [#allocation4], 1

</llo_original>
